<compile_context>
chip_gen: v6e
topology: v6e:2x2x1
jax: 0.10.0
libtpu: 0.0.40
codegen_flags: <defaults>
</compile_context>

<pallas_src>
import math

import jax
import jax.numpy as jnp
from jax import lax
from jax.experimental import pallas as pl
from jax.experimental.pallas import tpu as pltpu


def _critic_kernel(x_ref, w1_ref, b1_ref, w2_ref, b2_ref, out_ref):
    # x_ref : (TB, S) f32      w1_ref: (S, H) f32
    # b1_ref: (1, H)  f32      w2_ref: (1, H) f32
    # b2_ref: (1,)    f32 (SMEM scalar)
    # out_ref: (1, TB) f32   (lane-dense row; leading grid dim squeezed)
    #
    # Layer 1 on the MXU, f32 accumulation (exact parity with PyTorch f32).
    h = jnp.dot(x_ref[...], w1_ref[...], preferred_element_type=jnp.float32)
    h = jnp.maximum(h + b1_ref[...], 0.0)                        # (TB, H), VPU

    # Layer 2 as (1, H) x (TB, H)^T on the MXU -> lane-dense (1, TB) row
    # (unmasked vst instead of a lane-sparse (TB, 1) column store).
    v = lax.dot_general(w2_ref[...], h,
                        dimension_numbers=(((1,), (1,)), ((), ())),
                        preferred_element_type=jnp.float32)      # (1, TB)
    out_ref[...] = v + b2_ref[0]


def _round_up(x, m):
    return ((x + m - 1) // m) * m


def _choose_batch_tile(batch):
    """Rows per grid step.

    * batch <= 16  : one (padded) tile.
    * 16 < b <=2048: ~half the batch per tile (>= 2 grid steps so both v7x
                     TensorCores get work), rounded up to 16 rows.
    * larger       : 1024-row tiles (per-step overhead well amortized, tiles
                     comfortably inside even v7x's scoped VMEM).
    """
    if batch <= 16:
        return 16
    if batch <= 2048:
        return _round_up((batch + 1) // 2, 16)
    return 1024


def _vmem_limit_bytes():
    # Generation-aware scoped-VMEM limit: half of physical, capped at 64 MiB.
    # v5e/v6e (128 MiB physical) -> 64 MiB; v7x (64 MiB physical) -> 32 MiB.
    try:
        cap = int(pltpu.get_tpu_info().vmem_capacity_bytes)
    except Exception:
        cap = 64 * 1024 * 1024  # conservative fallback (v7x physical size)
    return min(64 * 1024 * 1024, max(cap // 2, 16 * 1024 * 1024))


def prepare_critic_params(w1, b1, w2, b2):
    """Hoist layout work out of the per-call path (do once after init/update).

    w1: (H, S), b1: (H,), w2: (1, H), b2: (1,)
    Returns (w1_t (S,H) f32, b1_row (1,H) f32, w2_row (1,H) f32, b2 (1,) f32).
    """
    H, S = w1.shape
    w1_t = jnp.asarray(w1, jnp.float32).T            # (S, H), contraction-ready
    b1_r = jnp.asarray(b1, jnp.float32).reshape(1, H)
    w2_r = jnp.asarray(w2, jnp.float32).reshape(1, H)  # lane-dense row
    b2_s = jnp.asarray(b2, jnp.float32).reshape(1,)
    return w1_t, b1_r, w2_r, b2_s


def critic_forward(x, params):
    """x: (batch, ...); params: output of prepare_critic_params."""
    w1_t, b1_r, w2_r, b2_s = params
    S, H = w1_t.shape

    batch = x.shape[0]
    x2d = x.reshape(batch, -1).astype(jnp.float32)   # matches x.reshape(batch, -1)
    assert x2d.shape[1] == S, "state_space mismatch"

    TB = _choose_batch_tile(batch)
    # Only tiny batches get padded (a few rows); otherwise Pallas masks the
    # ragged final block itself -- no extra HBM pass over x.
    if batch < TB:
        x2d = jnp.pad(x2d, ((0, TB - batch), (0, 0)))
    rows = x2d.shape[0]
    num_tiles = pl.cdiv(rows, TB)

    out = pl.pallas_call(
        _critic_kernel,
        out_shape=jax.ShapeDtypeStruct((num_tiles, 1, TB), jnp.float32),
        grid=(num_tiles,),
        in_specs=[
            pl.BlockSpec((TB, S), lambda i: (i, 0)),            # x tile (f32)
            pl.BlockSpec((S, H), lambda i: (0, 0)),             # W1^T (resident)
            pl.BlockSpec((1, H), lambda i: (0, 0)),             # b1 row
            pl.BlockSpec((1, H), lambda i: (0, 0)),             # w2 row
            pl.BlockSpec(memory_space=pltpu.MemorySpace.SMEM),  # b2 scalar
        ],
        out_specs=pl.BlockSpec((None, 1, TB), lambda i: (i, 0, 0)),  # lane-dense
        compiler_params=pltpu.CompilerParams(
            dimension_semantics=("parallel",),   # megacore sharding on v7x
            vmem_limit_bytes=_vmem_limit_bytes(),
        ),
    )(x2d, w1_t, b1_r, w2_r, b2_s)

    # (num_tiles, 1, TB) -> (batch, 1); tail rows (ragged/padded) are dropped.
    return out.reshape(num_tiles * TB)[:batch].reshape(batch, 1)


def init_critic_params(key, state_space, hidden_size=64):
    """Deterministic init mimicking torch.nn.Linear default (uniform +-1/sqrt(fan_in))."""
    k1, k2, k3, k4 = jax.random.split(key, 4)
    bound1 = 1.0 / math.sqrt(state_space)
    w1 = jax.random.uniform(k1, (hidden_size, state_space), jnp.float32,
                            -bound1, bound1)
    b1 = jax.random.uniform(k2, (hidden_size,), jnp.float32, -bound1, bound1)
    bound2 = 1.0 / math.sqrt(hidden_size)
    w2 = jax.random.uniform(k3, (1, hidden_size), jnp.float32, -bound2, bound2)
    b2 = jax.random.uniform(k4, (1,), jnp.float32, -bound2, bound2)
    return w1, b1, w2, b2


if __name__ == "__main__":
    key = jax.random.PRNGKey(0)
    kx, kp = jax.random.split(key)

    batch = 20            # exercises the 2-tile grid + ragged final input block
    state_space = 32
    hidden_size = 64

    x = jax.random.normal(kx, (batch, state_space), jnp.float32)
    w1, b1, w2, b2 = init_critic_params(kp, state_space, hidden_size)
    params = prepare_critic_params(w1, b1, w2, b2)   # hoisted layout work

    value = jax.block_until_ready(critic_forward(x, params))
    assert value.shape == (batch, 1)

    # Pure-f32 PyTorch-equivalent reference.
    h32 = jnp.maximum(x @ w1.T + b1, 0.0)
    v32 = h32 @ w2.T + b2
    assert jnp.allclose(value, v32, atol=1e-3, rtol=1e-3), (
        float(jnp.max(jnp.abs(value - v32))))

    # Tiny-batch single-tile (padded) path.
    x_small = x[:2]
    v_small = jax.block_until_ready(critic_forward(x_small, params))
    assert v_small.shape == (2, 1)
    assert jnp.allclose(v_small, v32[:2], atol=1e-3, rtol=1e-3)

    print("KERNEL_OK")
</pallas_src>

<mosaic_0001>
module attributes {stable_mosaic.version = 11 : i64} {
  func.func @_critic_kernel(%arg0: i32, %arg1: memref<16x32xf32, #tpu.memory_space<vmem>>, %arg2: memref<32x64xf32, #tpu.memory_space<vmem>>, %arg3: memref<1x64xf32, #tpu.memory_space<vmem>>, %arg4: memref<1x64xf32, #tpu.memory_space<vmem>>, %arg5: memref<1xf32, #tpu.memory_space<smem>>, %arg6: memref<1x1x16xf32, #tpu.memory_space<vmem>>) attributes {dimension_semantics = [#tpu.dimension_semantics<parallel>], iteration_bounds = array<i64: 2>, scalar_prefetch = 0 : i64, scratch_operands = 0 : i64, tpu.core_type = #tpu.core_type<tc>, window_params = [{transform_indices = @transform_0, window_bounds = array<i64: 16, 32>}, {pipeline_mode = #tpu.pipeline_mode<synchronous>, transform_indices = @transform_1, window_bounds = array<i64: 32, 64>}, {pipeline_mode = #tpu.pipeline_mode<synchronous>, transform_indices = @transform_2, window_bounds = array<i64: 1, 64>}, {pipeline_mode = #tpu.pipeline_mode<synchronous>, transform_indices = @transform_3, window_bounds = array<i64: 1, 64>}, {transform_indices = @transform_4, window_bounds = array<i64: 1>}, {transform_indices = @transform_5, window_bounds = array<i64: 1, 1, 16>}]} {
    %c0 = arith.constant 0 : index
    %c0_0 = arith.constant 0 : index
    %0 = vector.load %arg1[%c0, %c0_0] : memref<16x32xf32, #tpu.memory_space<vmem>>, vector<16x32xf32>
    %c0_1 = arith.constant 0 : index
    %c0_2 = arith.constant 0 : index
    %1 = vector.load %arg2[%c0_1, %c0_2] : memref<32x64xf32, #tpu.memory_space<vmem>>, vector<32x64xf32>
    %cst = arith.constant dense<0.000000e+00> : vector<16x64xf32>
    %2 = tpu.matmul %0, %1, %cst {dimension_numbers = #tpu.dot_dimension_numbers<[1], [0], [0], [1], [0, 0, 1, 1], [], []>} : vector<16x32xf32>, vector<32x64xf32>, vector<16x64xf32> -> vector<16x64xf32>
    %c0_3 = arith.constant 0 : index
    %c0_4 = arith.constant 0 : index
    %3 = vector.load %arg3[%c0_3, %c0_4] : memref<1x64xf32, #tpu.memory_space<vmem>>, vector<1x64xf32>
    %4 = vector.broadcast %3 : vector<1x64xf32> to vector<16x64xf32>
    %5 = arith.addf %2, %4 : vector<16x64xf32>
    %cst_5 = arith.constant 0.000000e+00 : f32
    %6 = vector.broadcast %cst_5 : f32 to vector<16x64xf32>
    %7 = arith.maximumf %5, %6 : vector<16x64xf32>
    %c0_6 = arith.constant 0 : index
    %c0_7 = arith.constant 0 : index
    %8 = vector.load %arg4[%c0_6, %c0_7] : memref<1x64xf32, #tpu.memory_space<vmem>>, vector<1x64xf32>
    %cst_8 = arith.constant dense<0.000000e+00> : vector<1x16xf32>
    %9 = tpu.matmul %8, %7, %cst_8 {dimension_numbers = #tpu.dot_dimension_numbers<[1], [1], [0], [0], [0, 0, 1, 0], [], []>} : vector<1x64xf32>, vector<16x64xf32>, vector<1x16xf32> -> vector<1x16xf32>
    %c0_9 = arith.constant 0 : index
    %10 = memref.load %arg5[%c0_9] : memref<1xf32, #tpu.memory_space<smem>>
    %11 = vector.broadcast %10 : f32 to vector<1x16xf32>
    %12 = arith.addf %9, %11 : vector<1x16xf32>
    %c0_10 = arith.constant 0 : index
    %c0_11 = arith.constant 0 : index
    %c0_12 = arith.constant 0 : index
    %13 = vector.load %arg6[%c0_10, %c0_11, %c0_12] : memref<1x1x16xf32, #tpu.memory_space<vmem>>, vector<1x1x16xf32>
    %14 = vector.shape_cast %13 : vector<1x1x16xf32> to vector<1x16xf32>
    %15 = vector.shape_cast %12 : vector<1x16xf32> to vector<1x1x16xf32>
    tpu.vector_store %arg6[%c0_10, %c0_11, %c0_12], %15 {strides = array<i32>} : memref<1x1x16xf32, #tpu.memory_space<vmem>>, vector<1x1x16xf32>,
    return
  }
  func.func @transform_0(%arg0: i32) -> (i32, i32) {
    %c0_i32 = arith.constant 0 : i32
    %c0_i32_0 = arith.constant 0 : i32
    return %arg0, %c0_i32 : i32, i32
  }
  func.func @transform_1(%arg0: i32) -> (i32, i32) {
    %c0_i32 = arith.constant 0 : i32
    %c0_i32_0 = arith.constant 0 : i32
    %c0_i32_1 = arith.constant 0 : i32
    return %c0_i32, %c0_i32_0 : i32, i32
  }
  func.func @transform_2(%arg0: i32) -> (i32, i32) {
    %c0_i32 = arith.constant 0 : i32
    %c0_i32_0 = arith.constant 0 : i32
    %c0_i32_1 = arith.constant 0 : i32
    return %c0_i32, %c0_i32_0 : i32, i32
  }
  func.func @transform_3(%arg0: i32) -> (i32, i32) {
    %c0_i32 = arith.constant 0 : i32
    %c0_i32_0 = arith.constant 0 : i32
    %c0_i32_1 = arith.constant 0 : i32
    return %c0_i32, %c0_i32_0 : i32, i32
  }
  func.func @transform_4(%arg0: i32) -> i32 {
    %c0_i32 = arith.constant 0 : i32
    %c0_i32_0 = arith.constant 0 : i32
    return %c0_i32 : i32
  }
  func.func @transform_5(%arg0: i32) -> (i32, i32, i32) {
    %c0_i32 = arith.constant 0 : i32
    %c0_i32_0 = arith.constant 0 : i32
    %c0_i32_1 = arith.constant 0 : i32
    return %arg0, %c0_i32, %c0_i32_0 : i32, i32, i32
  }
}

</mosaic_0001>

<llo_original>
// kernel: tpu_custom_call.1
$region0: #{tpu_custom_call.1}
  #allocation0 [shape = 'u32[]', space=smem, size = 0x4, offset = 0x4, fixed_abs, tag = 'smem constant byte address 0x4 - core index']
  #allocation1 [shape = 'u32[144,128]{1,0:T(1,128)}', space=vmem, size = 0x12000, scoped, tag = 'internal scratch']
  #allocation2 [shape = 'f32[1]{0:T(128)S(6)}', space=smem, size = 0x200, scoped, tag = 'scoped memory for tpu_custom_call.1']
  %s0 = inlined_call_operand.hbm [shape: f32[20,32], index: 0, kind: input, shape index: {}]
  %s1 = inlined_call_operand.hbm [shape: f32[32,64], index: 1, kind: input, shape index: {}]
  %s2 = inlined_call_operand.vmem [shape: f32[1,64], index: 2, kind: input, shape index: {}]
  %s3 = inlined_call_operand.vmem [shape: f32[1,64], index: 3, kind: input, shape index: {}]
  %s4 = inlined_call_operand.<no memory space> [shape: f32[1], index: 4, kind: input, shape index: {}]
  %s5 = inlined_call_operand.hbm [shape: f32[2,1,16], index: 5, kind: output, shape index: {}]
  %s6 = sld [smem:[#allocation0]]
  $region61: #{tpu_custom_call.1} parent=0
    _
  %s8 = ssub.s32 1, %s6
  %s9 = scalar_select 0, %s8, %s6
  %10 = sst [smem:[#allocation2]] %s4
  $region1: #{tpu_custom_call.1} parent=0
    #allocation3 [shape = 'u8[16384]{0}', space=vmem, size = 0x4000, scoped, tag = 'input window, operand 0']
    #allocation4 [shape = 's32[2]{0}', space=sflag, size = 0x8, scoped, tag = 'scoped memory for tpu_custom_call.1']
    #allocation5 [shape = 's32[2]{0}', space=sflag, size = 0x8, scoped, tag = 'scoped memory for tpu_custom_call.1']
    #allocation6 [shape = 'u8[16384]{0}', space=vmem, size = 0x4000, scoped, tag = 'input window, operand 1, single buffered']
    #allocation7 [shape = 's32[1]{0}', space=sflag, size = 0x4, scoped, tag = 'scoped memory for tpu_custom_call.1']
    #allocation8 [shape = 'u8[1024]{0}', space=vmem, size = 0x400, scoped, tag = 'output window, operand 0']
    %11 = vsyncpa [#allocation4], 0
    %s12 = scalar_lea.sflag [#allocation4], 1
    %13 = vsyncpa %s12, 0
    %14 = vsyncpa [#allocation7], 0
    %15 = vsyncpa [#allocation5], 0
    %s16 = scalar_lea.sflag [#allocation5], 1
    %17 = vsyncpa %s16, 0
    loop: start=0, step=1, limit=4
    $region2: #{tpu_custom_call.1} parent=1 // loop_pre_header
      _
    $region3: #{tpu_custom_call.1} parent=1 // loop_header
      %s19 = sphi 0, %s23
      %p20 = scmp.ge.s32.totalorder %s19, 4
      %s29 = sphi 0, %s31
      %s32 = sphi 0, %s29
      %s33 = sphi 0, %s32
      %s49 = sphi 0, %s33
      %s53 = sphi 0, %s53
      %s55 = sphi 0, %s53
      %s56 = sphi 0, %s55
      %s70 = sphi 0, %s56
      %s74 = sphi 0, %s74
      %s76 = sphi 0, %s74
      %s77 = sphi 0, %s76
      %s91 = sphi 0, %s77
      %s95 = sphi 0, %s95
      %s97 = sphi 0, %s95
      %s98 = sphi 0, %s97
      %s112 = sphi 0, %s98
      %s116 = sphi 0, %s116
      %s118 = sphi 0, %s116
      %s119 = sphi 0, %s118
      %s133 = sphi 0, %s119
      %s139 = sphi 0, %s141
      %s142 = sphi 0, %s139
      %s143 = sphi 0, %s142
      %s159 = sphi 0, %s143
    $region4: #{tpu_custom_call.1} parent=1 // loop_header_branch
      %22 = sbr.rel (%p20) target = $region8
    $region5: #{tpu_custom_call.1} parent=1 // loop_body
      %s24 = ssub.s32 %s19, 1
      %s25 = ssub.s32 %s19, 2
      %s26 = sadd.s32 %s19, 1
      %s27 = ssub.s32 %s19, %s26
      %p28 = scmp.eq.s32.totalorder %s27, 0
      %s30 = sadd.s32 %s29, 1
      %s31 = scalar_select %p28, %s29, %s30
      %p34 = pneg %p28
      %p35 = scmp.eq.s32.totalorder %s19, 1
      %p36 = por %p34, %p35
      %p37 = scmp.ne.s32.totalorder %s29, %s32
      %p38 = scmp.eq.s32.totalorder %s19, 0
      %p39 = por %p37, %p38
      %p40 = scmp.ne.s32.totalorder %s29, %s32
      %p41 = scmp.eq.s32.totalorder %s24, 1
      %p42 = por %p40, %p41
      %p43 = scmp.ne.s32.totalorder %s32, %s33
      %p44 = scmp.eq.s32.totalorder %s24, 0
      %p45 = por %p43, %p44
      %p46 = scmp.ne.s32.totalorder %s32, %s33
      %p47 = scmp.eq.s32.totalorder %s25, 1
      %p48 = por %p46, %p47
      %p50 = scmp.ne.s32.totalorder %s33, %s49
      %p51 = scmp.eq.s32.totalorder %s25, 0
      %p52 = por %p50, %p51
      %s54 = sadd.s32 %s53, 1
      %p57 = scmp.eq.s32.totalorder %s19, 1
      %p58 = scmp.ne.s32.totalorder %s53, %s55
      %p59 = scmp.eq.s32.totalorder %s19, 0
      %p60 = por %p58, %p59
      %p61 = scmp.ne.s32.totalorder %s53, %s55
      %p62 = scmp.eq.s32.totalorder %s24, 1
      %p63 = por %p61, %p62
      %p64 = scmp.ne.s32.totalorder %s55, %s56
      %p65 = scmp.eq.s32.totalorder %s24, 0
      %p66 = por %p64, %p65
      %p67 = scmp.ne.s32.totalorder %s55, %s56
      %p68 = scmp.eq.s32.totalorder %s25, 1
      %p69 = por %p67, %p68
      %p71 = scmp.ne.s32.totalorder %s56, %s70
      %p72 = scmp.eq.s32.totalorder %s25, 0
      %p73 = por %p71, %p72
      %s75 = sadd.s32 %s74, 1
      %p78 = scmp.eq.s32.totalorder %s19, 1
      %p79 = scmp.ne.s32.totalorder %s74, %s76
      %p80 = scmp.eq.s32.totalorder %s19, 0
      %p81 = por %p79, %p80
      %p82 = scmp.ne.s32.totalorder %s74, %s76
      %p83 = scmp.eq.s32.totalorder %s24, 1
      %p84 = por %p82, %p83
      %p85 = scmp.ne.s32.totalorder %s76, %s77
      %p86 = scmp.eq.s32.totalorder %s24, 0
      %p87 = por %p85, %p86
      %p88 = scmp.ne.s32.totalorder %s76, %s77
      %p89 = scmp.eq.s32.totalorder %s25, 1
      %p90 = por %p88, %p89
      %p92 = scmp.ne.s32.totalorder %s77, %s91
      %p93 = scmp.eq.s32.totalorder %s25, 0
      %p94 = por %p92, %p93
      %s96 = sadd.s32 %s95, 1
      %p99 = scmp.eq.s32.totalorder %s19, 1
      %p100 = scmp.ne.s32.totalorder %s95, %s97
      %p101 = scmp.eq.s32.totalorder %s19, 0
      %p102 = por %p100, %p101
      %p103 = scmp.ne.s32.totalorder %s95, %s97
      %p104 = scmp.eq.s32.totalorder %s24, 1
      %p105 = por %p103, %p104
      %p106 = scmp.ne.s32.totalorder %s97, %s98
      %p107 = scmp.eq.s32.totalorder %s24, 0
      %p108 = por %p106, %p107
      %p109 = scmp.ne.s32.totalorder %s97, %s98
      %p110 = scmp.eq.s32.totalorder %s25, 1
      %p111 = por %p109, %p110
      %p113 = scmp.ne.s32.totalorder %s98, %s112
      %p114 = scmp.eq.s32.totalorder %s25, 0
      %p115 = por %p113, %p114
      %s117 = sadd.s32 %s116, 1
      %p120 = scmp.eq.s32.totalorder %s19, 1
      %p121 = scmp.ne.s32.totalorder %s116, %s118
      %p122 = scmp.eq.s32.totalorder %s19, 0
      %p123 = por %p121, %p122
      %p124 = scmp.ne.s32.totalorder %s116, %s118
      %p125 = scmp.eq.s32.totalorder %s24, 1
      %p126 = por %p124, %p125
      %p127 = scmp.ne.s32.totalorder %s118, %s119
      %p128 = scmp.eq.s32.totalorder %s24, 0
      %p129 = por %p127, %p128
      %p130 = scmp.ne.s32.totalorder %s118, %s119
      %p131 = scmp.eq.s32.totalorder %s25, 1
      %p132 = por %p130, %p131
      %p134 = scmp.ne.s32.totalorder %s119, %s133
      %p135 = scmp.eq.s32.totalorder %s25, 0
      %p136 = por %p134, %p135
      %s137 = ssub.s32 %s19, %s26
      %p138 = scmp.eq.s32.totalorder %s137, 0
      %s140 = sadd.s32 %s139, 1
      %s141 = scalar_select %p138, %s139, %s140
      %p144 = pneg %p138
      %p145 = scmp.eq.s32.totalorder %s19, 1
      %p146 = por %p144, %p145
      %p147 = scmp.ne.s32.totalorder %s139, %s142
      %p148 = scmp.eq.s32.totalorder %s19, 0
      %p149 = por %p147, %p148
      %p150 = scmp.ne.s32.totalorder %s139, %s142
      %p151 = scmp.eq.s32.totalorder %s24, 1
      %p152 = por %p150, %p151
      %p153 = scmp.ne.s32.totalorder %s142, %s143
      %p154 = scmp.eq.s32.totalorder %s24, 0
      %p155 = por %p153, %p154
      %p156 = scmp.ne.s32.totalorder %s142, %s143
      %p157 = scmp.eq.s32.totalorder %s25, 1
      %p158 = por %p156, %p157
      %p160 = scmp.ne.s32.totalorder %s143, %s159
      %p161 = scmp.eq.s32.totalorder %s25, 0
      %p162 = por %p160, %p161
      %p163 = scmp.le.s32.totalorder 1, %s19
      %p164 = scmp.lt.s32.totalorder %s19, 3
      %p165 = pnand %p163, %p164
      %p166 = pneg %p165
      // Predicated region
      $region9: #{tpu_custom_call.1} parent=5 // pred_check
        _
      $region10: #{tpu_custom_call.1} parent=5 // pred_check_branch
        %168 = sbr.rel (%p165) target = $region12
      $region11: #{tpu_custom_call.1} parent=5 // pred_region
        %s169 = ssub.s32 %s19, 1
        // Predicated region
        $region13: #{tpu_custom_call.1} parent=11 // pred_check
          %p170 = pneg %p66
        $region14: #{tpu_custom_call.1} parent=11 // pred_check_branch
          %172 = sbr.rel (%p170) target = $region16
        $region15: #{tpu_custom_call.1} parent=11 // pred_region
          %s174 = ssub.s32 512, 512
          %175 = vsyncadd [#allocation7], %s174
          %s176 = sshll.u32 [#allocation6], 4
          %s177 = int_to_ptr.vmem [resolvable:$true] %s176
          %182 = dma.hbm_to_vmem [thread:$0]  %s1, 512, %s177, [#allocation7], 128, 128, 8
        $region16: #{tpu_custom_call.1} parent=11 // pred_fallthru
          _
        // Predicated region
        $region17: #{tpu_custom_call.1} parent=11 // pred_check
          %p183 = pneg %p87
        $region18: #{tpu_custom_call.1} parent=11 // pred_check_branch
          %185 = sbr.rel (%p183) target = $region20
        $region19: #{tpu_custom_call.1} parent=11 // pred_region
          _
        $region20: #{tpu_custom_call.1} parent=11 // pred_fallthru
          _
        // Predicated region
        $region21: #{tpu_custom_call.1} parent=11 // pred_check
          %p186 = pneg %p108
        $region22: #{tpu_custom_call.1} parent=11 // pred_check_branch
          %188 = sbr.rel (%p186) target = $region24
        $region23: #{tpu_custom_call.1} parent=11 // pred_region
          _
        $region24: #{tpu_custom_call.1} parent=11 // pred_fallthru
          _
        // Predicated region
        $region25: #{tpu_custom_call.1} parent=11 // pred_check
          %p189 = pneg %p129
        $region26: #{tpu_custom_call.1} parent=11 // pred_check_branch
          %191 = sbr.rel (%p189) target = $region28
        $region27: #{tpu_custom_call.1} parent=11 // pred_region
          _
        $region28: #{tpu_custom_call.1} parent=11 // pred_fallthru
          _
      $region12: #{tpu_custom_call.1} parent=5 // pred_fallthru
        _
      %p192 = scmp.lt.s32.totalorder %s19, 2
      // Predicated region
      $region29: #{tpu_custom_call.1} parent=5 // pred_check
        %p193 = pneg %p192
      $region30: #{tpu_custom_call.1} parent=5 // pred_check_branch
        %195 = sbr.rel (%p193) target = $region32
      $region31: #{tpu_custom_call.1} parent=5 // pred_region
        // Predicated region
        $region33: #{tpu_custom_call.1} parent=31 // pred_check
          %p196 = pneg %p39
        $region34: #{tpu_custom_call.1} parent=31 // pred_check_branch
          %198 = sbr.rel (%p196) target = $region36
        $region35: #{tpu_custom_call.1} parent=31 // pred_region
          %s199 = sand.u32 %s29, 1
          %s200 = scalar_lea.sflag [#allocation4], %s199
          %s201 = sand.u32 %s29, 1
          %s202 = smul.addr %s201, 16
          %s203 = scalar_lea.vmem [#allocation3], %s202
          %s204 = smul.u32 2, %s19
          %s205 = ssub.s32 3, %s204
          %p206 = scmp.lt.s32.totalorder %s205, 2
          %s207 = scalar_select %p206, %s205, 2
          %s208 = smul.u32 128, %s207
          %s210 = ssub.s32 256, %s208
          %211 = vsyncadd %s200, %s210
          %p212 = scmp.ne.s32.totalorder 0, %s208
          %s213 = smul.addr %s204, 128
          %s214 = scalar_lea.hbm %s0, %s213
          %s215 = smul.u32 8, %s207
          %s216 = sshll.u32 %s203, 4
          %s217 = int_to_ptr.vmem [resolvable:$true] %s216
          %s218 = sshll.u32 %s215, 4
          %222 = dma.hbm_to_vmem [thread:$0]  (%p212), %s214, %s218, %s217, %s200, 128, 128, 8
        $region36: #{tpu_custom_call.1} parent=31 // pred_fallthru
          _
      $region32: #{tpu_custom_call.1} parent=5 // pred_fallthru
        _
      %p223 = scmp.le.s32.totalorder 1, %s19
      %p224 = scmp.lt.s32.totalorder %s19, 3
      %p225 = pnand %p223, %p224
      %p226 = pneg %p225
      // Predicated region
      $region37: #{tpu_custom_call.1} parent=5 // pred_check
        _
      $region38: #{tpu_custom_call.1} parent=5 // pred_check_branch
        %228 = sbr.rel (%p225) target = $region40
      $region39: #{tpu_custom_call.1} parent=5 // pred_region
        %s229 = ssub.s32 %s19, 1
        %s230 = sand.u32 %s32, 1
        %s231 = scalar_lea.sflag [#allocation4], %s230
        %s232 = sand.u32 %s32, 1
        %s233 = smul.addr %s232, 16
        %s234 = scalar_lea.vmem [#allocation3], %s233
        // Predicated region
        $region41: #{tpu_custom_call.1} parent=39 // pred_check
          %p235 = pneg %p45
        $region42: #{tpu_custom_call.1} parent=39 // pred_check_branch
          %237 = sbr.rel (%p235) target = $region44
        $region43: #{tpu_custom_call.1} parent=39 // pred_region
          %238 = dma.done %s231, 256
        $region44: #{tpu_custom_call.1} parent=39 // pred_fallthru
          _
        // Predicated region
        $region45: #{tpu_custom_call.1} parent=39 // pred_check
          %p239 = pneg %p66
        $region46: #{tpu_custom_call.1} parent=39 // pred_check_branch
          %241 = sbr.rel (%p239) target = $region48
        $region47: #{tpu_custom_call.1} parent=39 // pred_region
          %242 = dma.done [#allocation7], 512
        $region48: #{tpu_custom_call.1} parent=39 // pred_fallthru
          _
        %s243 = sand.u32 %s32, 1
        %s244 = scalar_lea.sflag [#allocation4], %s243
        %s245 = sand.u32 %s32, 1
        %s246 = smul.addr %s245, 16
        %s247 = scalar_lea.vmem [#allocation3], %s246
        %p248 = pneg %p45
        %p249 = pneg %p42
        %p250 = pneg %p66
        %p251 = pneg %p63
        %p252 = pneg %p87
        %p253 = pneg %p84
        %p254 = pneg %p108
        %p255 = pneg %p105
        %p256 = pneg %p129
        %p257 = pneg %p126
        %p258 = pneg %p155
        %p259 = pneg %p152
        %s260 = sand.u32 %s142, 1
        %s261 = scalar_lea.sflag [#allocation5], %s260
        %s262 = sand.u32 %s142, 1
        %s263 = scalar_lea.vmem [#allocation8], %s262
        %s264 = smul.u32 2, %s24
        %s265 = ssub.s32 3, %s264
        %p266 = scmp.lt.s32.totalorder %s265, 2
        %s267 = scalar_select %p266, %s265, 2
        %s268 = smul.u32 128, %s267
        %v269 = vld [vmem:[%s234] sm:$0xff]
        %v270 = vld [vmem:[%s234 + $0x8] sm:$0xff]
        %v271 = vld [vmem:[#allocation6] sm:$0xff]
        %v272 = vld [vmem:[#allocation6 + $0x8] sm:$0xff]
        %v273 = vld [vmem:[#allocation6 + $0x10] sm:$0xff]
        %v274 = vld [vmem:[#allocation6 + $0x18] sm:$0xff]
        %v275 = vld [vmem:[%s2] sm:$0x1]
        %v277 = vlaneseq
        %v278 = vshrl.u32 %v277, 7
        %v279 = vsub.s32 0, %v278
        %v280 = vrot.slane %v275, %v279
        %vm282 = vcmask 261120
        %v284 = vsel %vm282, %v269, 0
        %v287 = vsel %vm282, %v270, 0
        %289 = vmatprep.subr.mxu0 0.0
        %290 = vmatpush1.msra.mxu0 0.0
        %291 = vmatprep.subr.mxu0 0.0
        %292 = vmatpush1.msra.mxu0 0.0
        %293 = vmatprep.subr.mxu0 0.0
        %294 = vmatpush1.msra.mxu0 0.0
        %295 = vmatprep.subr.mxu0 0.0
        %296 = vmatpush1.msra.mxu0 0.0
        %297 = vmatprep.subr.mxu0 0.0
        %298 = vmatpush1.msra.mxu0 0.0
        %299 = vmatprep.subr.mxu0 0.0
        %300 = vmatpush1.msra.mxu0 0.0
        %301 = vmatprep.subr.mxu0 0.0
        %302 = vmatpush1.msra.mxu0 0.0
        %303 = vmatprep.subr.mxu0 0.0
        %304 = vmatpush1.msra.mxu0 0.0
        %305 = vmatprep.subr.mxu0 0.0
        %306 = vmatpush1.msra.mxu0 0.0
        %307 = vmatprep.subr.mxu0 0.0
        %308 = vmatpush1.msra.mxu0 0.0
        %309 = vmatprep.subr.mxu0 0.0
        %310 = vmatpush1.msra.mxu0 0.0
        %311 = vmatprep.subr.mxu0 0.0
        %312 = vmatpush1.msra.mxu0 0.0
        %313 = vmatprep.subr.mxu0 0.0
        %314 = vmatpush1.msra.mxu0 %v274
        %315 = vmatprep.subr.mxu0 0.0
        %316 = vmatpush1.msra.mxu0 %v273
        %317 = vmatprep.subr.mxu0 0.0
        %318 = vmatpush1.msra.mxu0 %v272
        %319 = vmatprep.subr.mxu0 0.0
        %320 = vmatpush1.msra.mxu0 %v271
        %321 = vmatprep.subr.mxu0 0.0
        %322 = vmatpush2.msra.mxu0 0.0
        %323 = vmatprep.subr.mxu0 0.0
        %324 = vmatpush2.msra.mxu0 0.0
        %325 = vmatprep.subr.mxu0 0.0
        %326 = vmatpush2.msra.mxu0 0.0
        %327 = vmatprep.subr.mxu0 0.0
        %328 = vmatpush2.msra.mxu0 0.0
        %329 = vmatprep.subr.mxu0 0.0
        %330 = vmatpush2.msra.mxu0 0.0
        %331 = vmatprep.subr.mxu0 0.0
        %332 = vmatpush2.msra.mxu0 0.0
        %333 = vmatprep.subr.mxu0 0.0
        %334 = vmatpush2.msra.mxu0 0.0
        %335 = vmatprep.subr.mxu0 0.0
        %336 = vmatpush2.msra.mxu0 0.0
        %337 = vmatprep.subr.mxu0 0.0
        %338 = vmatpush2.msra.mxu0 0.0
        %339 = vmatprep.subr.mxu0 0.0
        %340 = vmatpush2.msra.mxu0 0.0
        %341 = vmatprep.subr.mxu0 0.0
        %342 = vmatpush2.msra.mxu0 0.0
        %343 = vmatprep.subr.mxu0 0.0
        %344 = vmatpush2.msra.mxu0 0.0
        %345 = vmatprep.subr.mxu0 0.0
        %346 = vmatpush2.msra.mxu0 0.0
        %347 = vmatprep.subr.mxu0 0.0
        %348 = vmatpush2.msra.mxu0 0.0
        %349 = vmatprep.subr.mxu0 0.0
        %350 = vmatpush2.msra.mxu0 0.0
        %351 = vmatprep.subr.mxu0 0.0
        %352 = vmatpush2.msra.mxu0 0.0
        %353 = vmatprep.mubr.f32.mxu0 0.0
        %354 = vmatmul.mubr.f32.gmra.mxu0 %v284
        %v355 = vpop.f32.mrf.mxu0
        %v356 = vadd.f32 %v280, %v355
        %v357 = vpop.f32.mrf.mxu0
        %358 = vmatprep.mubr.f32.mxu0 0.0
        %359 = vmatmul.mubr.f32.gmra.mxu0 %v287
        %v360 = vpop.f32.mrf.mxu0
        %v361 = vadd.f32 %v280, %v360
        %v362 = vpop.f32.mrf.mxu0
        %363 = vdwg.mxu0
        %v364 = vmax.f32 %v356, 0.0
        %v365 = vmax.f32 %v361, 0.0
        %v366 = vld [vmem:[%s3] sm:$0x1]
        %s367 = sld [smem:[#allocation2]]
        %v368 = vstv %s367
        %vm369 = vcmask 523264
        %v371 = vsel %vm369, %v366, 0
        %v374 = vsel %vm369, %v364, 0
        %v377 = vsel %vm369, %v365, 0
        %379 = vmatprep.subr.mxu0 0.0
        %380 = vmatpush1.xpose.msra.mxu0 0.0
        %381 = vmatprep.subr.mxu0 0.0
        %382 = vmatpush1.xpose.msra.mxu0 0.0
        %383 = vmatprep.subr.mxu0 0.0
        %384 = vmatpush1.xpose.msra.mxu0 0.0
        %385 = vmatprep.subr.mxu0 0.0
        %386 = vmatpush1.xpose.msra.mxu0 0.0
        %387 = vmatprep.subr.mxu0 0.0
        %388 = vmatpush1.xpose.msra.mxu0 0.0
        %389 = vmatprep.subr.mxu0 0.0
        %390 = vmatpush1.xpose.msra.mxu0 0.0
        %391 = vmatprep.subr.mxu0 0.0
        %392 = vmatpush1.xpose.msra.mxu0 0.0
        %393 = vmatprep.subr.mxu0 0.0
        %394 = vmatpush1.xpose.msra.mxu0 0.0
        %395 = vmatprep.subr.mxu0 0.0
        %396 = vmatpush1.xpose.msra.mxu0 0.0
        %397 = vmatprep.subr.mxu0 0.0
        %398 = vmatpush1.xpose.msra.mxu0 0.0
        %399 = vmatprep.subr.mxu0 0.0
        %400 = vmatpush1.xpose.msra.mxu0 0.0
        %401 = vmatprep.subr.mxu0 0.0
        %402 = vmatpush1.xpose.msra.mxu0 0.0
        %403 = vmatprep.subr.mxu0 0.0
        %404 = vmatpush1.xpose.msra.mxu0 0.0
        %405 = vmatprep.subr.mxu0 0.0
        %406 = vmatpush1.xpose.msra.mxu0 0.0
        %407 = vmatprep.subr.mxu0 0.0
        %408 = vmatpush1.xpose.msra.mxu0 %v377
        %409 = vmatprep.subr.mxu0 0.0
        %410 = vmatpush1.xpose.msra.mxu0 %v374
        %411 = vmatprep.subr.mxu0 0.0
        %412 = vmatpush2.xpose.msra.mxu0 0.0
        %413 = vmatprep.subr.mxu0 0.0
        %414 = vmatpush2.xpose.msra.mxu0 0.0
        %415 = vmatprep.subr.mxu0 0.0
        %416 = vmatpush2.xpose.msra.mxu0 0.0
        %417 = vmatprep.subr.mxu0 0.0
        %418 = vmatpush2.xpose.msra.mxu0 0.0
        %419 = vmatprep.subr.mxu0 0.0
        %420 = vmatpush2.xpose.msra.mxu0 0.0
        %421 = vmatprep.subr.mxu0 0.0
        %422 = vmatpush2.xpose.msra.mxu0 0.0
        %423 = vmatprep.subr.mxu0 0.0
        %424 = vmatpush2.xpose.msra.mxu0 0.0
        %425 = vmatprep.subr.mxu0 0.0
        %426 = vmatpush2.xpose.msra.mxu0 0.0
        %427 = vmatprep.subr.mxu0 0.0
        %428 = vmatpush2.xpose.msra.mxu0 0.0
        %429 = vmatprep.subr.mxu0 0.0
        %430 = vmatpush2.xpose.msra.mxu0 0.0
        %431 = vmatprep.subr.mxu0 0.0
        %432 = vmatpush2.xpose.msra.mxu0 0.0
        %433 = vmatprep.subr.mxu0 0.0
        %434 = vmatpush2.xpose.msra.mxu0 0.0
        %435 = vmatprep.subr.mxu0 0.0
        %436 = vmatpush2.xpose.msra.mxu0 0.0
        %437 = vmatprep.subr.mxu0 0.0
        %438 = vmatpush2.xpose.msra.mxu0 0.0
        %439 = vmatprep.subr.mxu0 0.0
        %440 = vmatpush2.xpose.msra.mxu0 0.0
        %441 = vmatprep.subr.mxu0 0.0
        %442 = vmatpush2.xpose.msra.mxu0 0.0
        %443 = vmatprep.mubr.f32.mxu0 0.0
        %444 = vmatmul.mubr.f32.gmra.mxu0 %v371
        %v445 = vpop.f32.mrf.mxu0
        %v446 = vadd.f32 %v368, %v445
        %v447 = vpop.f32.mrf.mxu0
        %448 = vdwg.mxu0
        %vm449 = vcmask 122880
        %450 = vst.msk [vmem:[%s263] sm:$0x1] %vm449, %v446
        %s451 = sand.u32 %s142, 1
        %s452 = scalar_lea.sflag [#allocation5], %s451
        %s453 = sand.u32 %s142, 1
        %s454 = scalar_lea.vmem [#allocation8], %s453
        // Predicated region
        $region49: #{tpu_custom_call.1} parent=39 // pred_check
          %p455 = pneg %p152
        $region50: #{tpu_custom_call.1} parent=39 // pred_check_branch
          %457 = sbr.rel (%p455) target = $region52
        $region51: #{tpu_custom_call.1} parent=39 // pred_region
          %s459 = ssub.s32 16, 16
          %460 = vsyncadd %s452, %s459
          %s461 = smul.addr %s24, 16
          %s462 = scalar_lea.hbm %s5, %s461
          %s464 = sshll.u32 %s454, 4
          %s465 = int_to_ptr.vmem [resolvable:$true] %s464
          %467 = dma.vmem_to_hbm [thread:$0]  %s465, 16, %s462, %s452
        $region52: #{tpu_custom_call.1} parent=39 // pred_fallthru
          _
      $region40: #{tpu_custom_call.1} parent=5 // pred_fallthru
        _
      %p468 = scmp.le.s32.totalorder 2, %s19
      // Predicated region
      $region53: #{tpu_custom_call.1} parent=5 // pred_check
        %p469 = pneg %p468
      $region54: #{tpu_custom_call.1} parent=5 // pred_check_branch
        %471 = sbr.rel (%p469) target = $region56
      $region55: #{tpu_custom_call.1} parent=5 // pred_region
        %s472 = ssub.s32 %s19, 2
        // Predicated region
        $region57: #{tpu_custom_call.1} parent=55 // pred_check
          %p473 = pneg %p158
        $region58: #{tpu_custom_call.1} parent=55 // pred_check_branch
          %475 = sbr.rel (%p473) target = $region60
        $region59: #{tpu_custom_call.1} parent=55 // pred_region
          %s476 = sand.u32 %s143, 1
          %s477 = scalar_lea.sflag [#allocation5], %s476
          %s478 = sand.u32 %s143, 1
          %s479 = scalar_lea.vmem [#allocation8], %s478
          %480 = dma.done %s477, 16
        $region60: #{tpu_custom_call.1} parent=55 // pred_fallthru
          _
      $region56: #{tpu_custom_call.1} parent=5 // pred_fallthru
        _
    $region6: #{tpu_custom_call.1} parent=1 // loop_footer
      %s23 = sadd.s32 1, %s19
    $region7: #{tpu_custom_call.1} parent=1 // loop_footer_branch
      %18 = sbr.rel target = $region3
    $region8: #{tpu_custom_call.1} parent=1 // loop_exit
      _
    %481 = vsyncpa [#allocation4], 1
    %s482 = scalar_lea.sflag [#allocation4], 1
    %483 = vsyncpa %s482, 1
    %484 = vsyncpa [#allocation7], 1
    %485 = vsyncpa [#allocation5], 1
    %s486 = scalar_lea.sflag [#allocation5], 1
    %487 = vsyncpa %s486, 1

</llo_original>
